<compile_context>
chip_gen: v6e
topology: v6e:2x2x1
jax: 0.10.0
libtpu: 0.0.40
codegen_flags: <defaults>
</compile_context>

<pallas_src>
import math
import functools

import jax
import jax.numpy as jnp
from jax.experimental import pallas as pl
from jax.experimental.pallas import tpu as pltpu

SQRT2 = math.sqrt(2.0)

# Small-but-consistent test config (module hard-codes input dim 784; width shrunk
# from 1000 for the test; depth=3 matches the module default -> 1 hidden layer).
DEPTH = 3
WIDTH = 128
IN_DIM = 784
BATCH = 16
BLOCK_BATCH = 8


def _mlp_kernel(n_weights, x_ref, *rest):
    """Fused MLP forward for one batch tile. rest = (w_0..w_{n-1}, o_ref), all VMEM."""
    w_refs = rest[:n_weights]
    o_ref = rest[n_weights]

    h = x_ref[...]
    # Hidden layers on the MXU. The sqrt(2) activation scale is already folded into
    # the *next* layer's weights, so only the relu remains (VPU max).
    for w_ref in w_refs[:-1]:
        h = jnp.maximum(
            jnp.dot(h, w_ref[...], preferred_element_type=jnp.float32), 0.0)
    # Final Linear(width, 1): a (tb,W)x(W,1) dot wastes a full MXU pass for one
    # output column -> do a VPU multiply + lane reduction instead; the final weight
    # arrives as a (1, W) row vector (broadcasts over the batch tile).
    o_ref[...] = jnp.sum(h * w_refs[-1][...], axis=-1,
                         keepdims=True).astype(o_ref.dtype)


def simplenet_forward(x, folded_weights, *, block_batch=BLOCK_BATCH):
    """x: (B, 784) f32. folded_weights: output of fold_weights(...)."""
    n_w = len(folded_weights)
    B, in_dim = x.shape

    tb = min(block_batch, B)
    assert B % tb == 0, "batch must be a multiple of the batch tile"
    grid = (B // tb,)

    # x / out move with the batch grid; weights use a constant block index so they
    # are fetched once and stay resident in VMEM across all grid steps.
    in_specs = [pl.BlockSpec((tb, in_dim), lambda b: (b, 0))]
    in_specs += [pl.BlockSpec(w.shape, lambda b: (0, 0)) for w in folded_weights]
    out_specs = pl.BlockSpec((tb, 1), lambda b: (b, 0))

    kernel = functools.partial(_mlp_kernel, n_w)
    return pl.pallas_call(
        kernel,
        out_shape=jax.ShapeDtypeStruct((B, 1), x.dtype),
        grid=grid,
        in_specs=in_specs,
        out_specs=out_specs,
        compiler_params=pltpu.CompilerParams(
            dimension_semantics=("parallel",)),
    )(x, *folded_weights)


def init_weights(key, depth, width, in_dim):
    """nn.Linear(bias=False) default init: U(-1/sqrt(fan_in), +1/sqrt(fan_in)).
    Stored as (in, out), i.e. transposed vs. PyTorch's (out, in)."""
    dims = [(in_dim, width)] + [(width, width)] * (depth - 2) + [(width, 1)]
    weights = []
    for fan_in, fan_out in dims:
        key, sub = jax.random.split(key)
        bound = 1.0 / math.sqrt(fan_in)
        weights.append(jax.random.uniform(sub, (fan_in, fan_out), jnp.float32,
                                          minval=-bound, maxval=bound))
    return weights


def fold_weights(weights):
    """One-time constant fold (NOT a per-call wrapper op):
        relu(h) * sqrt(2) @ W  ==  relu(h) @ (sqrt(2) * W)
    so scale every weight that follows an activation. Also store the final
    (width, 1) weight as a (1, width) row for the VPU-reduce last layer."""
    folded = [weights[0]] + [w * SQRT2 for w in weights[1:]]
    folded[-1] = folded[-1].T
    return folded


def reference_forward(x, weights):
    """Pure-JAX reference matching the PyTorch module exactly (unfolded weights).
    Uses HIGHEST matmul precision so the f32 comparison is meaningful on TPU."""
    h = x
    for w in weights[:-1]:
        h = jnp.maximum(
            jnp.dot(h, w, precision=jax.lax.Precision.HIGHEST), 0.0) * SQRT2
    return jnp.dot(h, weights[-1], precision=jax.lax.Precision.HIGHEST)


if __name__ == "__main__":
    key = jax.random.PRNGKey(0)
    kx, kw = jax.random.split(key)

    x = jax.random.normal(kx, (BATCH, IN_DIM), jnp.float32)
    weights = init_weights(kw, DEPTH, WIDTH, IN_DIM)   # module parameters (in, out)
    folded = fold_weights(weights)                     # one-time prep for the kernel

    out = jax.block_until_ready(simplenet_forward(x, folded))

    ref = reference_forward(x, weights)
    assert out.shape == (BATCH, 1), out.shape
    # f32 accumulation over ~1000 terms with differing summation order: 1e-4 is tight
    # enough to catch real bugs without tripping on rounding.
    assert jnp.allclose(out, ref, atol=1e-4, rtol=1e-4), "mismatch vs JAX reference"

    print("KERNEL_OK")
</pallas_src>

<mosaic_0001>
module attributes {stable_mosaic.version = 11 : i64} {
  func.func @_mlp_kernel(%arg0: i32, %arg1: memref<8x784xf32, #tpu.memory_space<vmem>>, %arg2: memref<784x128xf32, #tpu.memory_space<vmem>>, %arg3: memref<128x128xf32, #tpu.memory_space<vmem>>, %arg4: memref<1x128xf32, #tpu.memory_space<vmem>>, %arg5: memref<8x1xf32, #tpu.memory_space<vmem>>) attributes {dimension_semantics = [#tpu.dimension_semantics<parallel>], iteration_bounds = array<i64: 2>, scalar_prefetch = 0 : i64, scratch_operands = 0 : i64, tpu.core_type = #tpu.core_type<tc>, window_params = [{transform_indices = @transform_0, window_bounds = array<i64: 8, 784>}, {pipeline_mode = #tpu.pipeline_mode<synchronous>, transform_indices = @transform_1, window_bounds = array<i64: 784, 128>}, {pipeline_mode = #tpu.pipeline_mode<synchronous>, transform_indices = @transform_2, window_bounds = array<i64: 128, 128>}, {pipeline_mode = #tpu.pipeline_mode<synchronous>, transform_indices = @transform_3, window_bounds = array<i64: 1, 128>}, {transform_indices = @transform_4, window_bounds = array<i64: 8, 1>}]} {
    %c0 = arith.constant 0 : index
    %c0_0 = arith.constant 0 : index
    %0 = vector.load %arg1[%c0, %c0_0] : memref<8x784xf32, #tpu.memory_space<vmem>>, vector<8x784xf32>
    %c0_1 = arith.constant 0 : index
    %c0_2 = arith.constant 0 : index
    %1 = vector.load %arg2[%c0_1, %c0_2] : memref<784x128xf32, #tpu.memory_space<vmem>>, vector<784x128xf32>
    %cst = arith.constant dense<0.000000e+00> : vector<8x128xf32>
    %2 = tpu.matmul %0, %1, %cst {dimension_numbers = #tpu.dot_dimension_numbers<[1], [0], [0], [1], [0, 0, 1, 1], [], []>} : vector<8x784xf32>, vector<784x128xf32>, vector<8x128xf32> -> vector<8x128xf32>
    %cst_3 = arith.constant 0.000000e+00 : f32
    %3 = vector.broadcast %cst_3 : f32 to vector<8x128xf32>
    %4 = arith.maximumf %2, %3 : vector<8x128xf32>
    %c0_4 = arith.constant 0 : index
    %c0_5 = arith.constant 0 : index
    %5 = vector.load %arg3[%c0_4, %c0_5] : memref<128x128xf32, #tpu.memory_space<vmem>>, vector<128x128xf32>
    %cst_6 = arith.constant dense<0.000000e+00> : vector<8x128xf32>
    %6 = tpu.matmul %4, %5, %cst_6 {dimension_numbers = #tpu.dot_dimension_numbers<[1], [0], [0], [1], [0, 0, 1, 1], [], []>} : vector<8x128xf32>, vector<128x128xf32>, vector<8x128xf32> -> vector<8x128xf32>
    %cst_7 = arith.constant 0.000000e+00 : f32
    %7 = vector.broadcast %cst_7 : f32 to vector<8x128xf32>
    %8 = arith.maximumf %6, %7 : vector<8x128xf32>
    %c0_8 = arith.constant 0 : index
    %c0_9 = arith.constant 0 : index
    %9 = vector.load %arg4[%c0_8, %c0_9] : memref<1x128xf32, #tpu.memory_space<vmem>>, vector<1x128xf32>
    %10 = vector.broadcast %9 : vector<1x128xf32> to vector<8x128xf32>
    %11 = arith.mulf %8, %10 : vector<8x128xf32>
    %cst_10 = arith.constant dense<0.000000e+00> : vector<8xf32>
    %12 = vector.multi_reduction <add>, %11, %cst_10 [1] : vector<8x128xf32> to vector<8xf32>
    %13 = vector.shape_cast %12 : vector<8xf32> to vector<8x1xf32>
    %c0_11 = arith.constant 0 : index
    %c0_12 = arith.constant 0 : index
    %14 = vector.load %arg5[%c0_11, %c0_12] : memref<8x1xf32, #tpu.memory_space<vmem>>, vector<8x1xf32>
    tpu.vector_store %arg5[%c0_11, %c0_12], %13 {strides = array<i32>} : memref<8x1xf32, #tpu.memory_space<vmem>>, vector<8x1xf32>,
    return
  }
  func.func @transform_0(%arg0: i32) -> (i32, i32) {
    %c0_i32 = arith.constant 0 : i32
    %c0_i32_0 = arith.constant 0 : i32
    return %arg0, %c0_i32 : i32, i32
  }
  func.func @transform_1(%arg0: i32) -> (i32, i32) {
    %c0_i32 = arith.constant 0 : i32
    %c0_i32_0 = arith.constant 0 : i32
    %c0_i32_1 = arith.constant 0 : i32
    return %c0_i32, %c0_i32_0 : i32, i32
  }
  func.func @transform_2(%arg0: i32) -> (i32, i32) {
    %c0_i32 = arith.constant 0 : i32
    %c0_i32_0 = arith.constant 0 : i32
    %c0_i32_1 = arith.constant 0 : i32
    return %c0_i32, %c0_i32_0 : i32, i32
  }
  func.func @transform_3(%arg0: i32) -> (i32, i32) {
    %c0_i32 = arith.constant 0 : i32
    %c0_i32_0 = arith.constant 0 : i32
    %c0_i32_1 = arith.constant 0 : i32
    return %c0_i32, %c0_i32_0 : i32, i32
  }
  func.func @transform_4(%arg0: i32) -> (i32, i32) {
    %c0_i32 = arith.constant 0 : i32
    %c0_i32_0 = arith.constant 0 : i32
    return %arg0, %c0_i32 : i32, i32
  }
}

</mosaic_0001>

<llo_original>
// kernel: tpu_custom_call.1
$region0: #{tpu_custom_call.1}
  #allocation0 [shape = 'u32[]', space=smem, size = 0x4, offset = 0x4, fixed_abs, tag = 'smem constant byte address 0x4 - core index']
  #allocation1 [shape = 'u32[144,128]{1,0:T(1,128)}', space=vmem, size = 0x12000, scoped, tag = 'internal scratch']
  %s0 = inlined_call_operand.hbm [shape: f32[16,784], index: 0, kind: input, shape index: {}]
  %s1 = inlined_call_operand.hbm [shape: f32[784,128], index: 1, kind: input, shape index: {}]
  %s2 = inlined_call_operand.hbm [shape: f32[128,128], index: 2, kind: input, shape index: {}]
  %s3 = inlined_call_operand.vmem [shape: f32[1,128], index: 3, kind: input, shape index: {}]
  %s4 = inlined_call_operand.vmem [shape: f32[16,1], index: 4, kind: output, shape index: {}]
  %s5 = sld [smem:[#allocation0]]
  $region61: #{tpu_custom_call.1} parent=0
    _
  %s7 = ssub.s32 1, %s5
  %s8 = scalar_select 0, %s7, %s5
  $region1: #{tpu_custom_call.1} parent=0
    #allocation2 [shape = 'u8[57344]{0}', space=vmem, size = 0xe000, scoped, tag = 'input window, operand 0']
    #allocation3 [shape = 's32[2]{0}', space=sflag, size = 0x8, scoped, tag = 'scoped memory for tpu_custom_call.1']
    #allocation4 [shape = 'u8[401408]{0}', space=vmem, size = 0x62000, scoped, tag = 'input window, operand 1, single buffered']
    #allocation5 [shape = 's32[1]{0}', space=sflag, size = 0x4, scoped, tag = 'scoped memory for tpu_custom_call.1']
    #allocation6 [shape = 'u8[65536]{0}', space=vmem, size = 0x10000, scoped, tag = 'input window, operand 2, single buffered']
    %9 = vsyncpa [#allocation3], 0
    %s10 = scalar_lea.sflag [#allocation3], 1
    %11 = vsyncpa %s10, 0
    %12 = vsyncpa [#allocation5], 0
    loop: start=0, step=1, limit=4
    $region2: #{tpu_custom_call.1} parent=1 // loop_pre_header
      _
    $region3: #{tpu_custom_call.1} parent=1 // loop_header
      %s14 = sphi 0, %s18
      %p15 = scmp.ge.s32.totalorder %s14, 4
      %s24 = sphi 0, %s26
      %s27 = sphi 0, %s24
      %s28 = sphi 0, %s27
      %s44 = sphi 0, %s28
      %s48 = sphi 0, %s48
      %s50 = sphi 0, %s48
      %s51 = sphi 0, %s50
      %s65 = sphi 0, %s51
      %s69 = sphi 0, %s69
      %s71 = sphi 0, %s69
      %s72 = sphi 0, %s71
      %s86 = sphi 0, %s72
      %s90 = sphi 0, %s90
      %s92 = sphi 0, %s90
      %s93 = sphi 0, %s92
      %s107 = sphi 0, %s93
      %s113 = sphi 0, %s115
      %s116 = sphi 0, %s113
      %s117 = sphi 0, %s116
      %s133 = sphi 0, %s117
    $region4: #{tpu_custom_call.1} parent=1 // loop_header_branch
      %17 = sbr.rel (%p15) target = $region8
    $region5: #{tpu_custom_call.1} parent=1 // loop_body
      %s19 = ssub.s32 %s14, 1
      %s20 = ssub.s32 %s14, 2
      %s21 = sadd.s32 %s14, 1
      %s22 = ssub.s32 %s14, %s21
      %p23 = scmp.eq.s32.totalorder %s22, 0
      %s25 = sadd.s32 %s24, 1
      %s26 = scalar_select %p23, %s24, %s25
      %p29 = pneg %p23
      %p30 = scmp.eq.s32.totalorder %s14, 1
      %p31 = por %p29, %p30
      %p32 = scmp.ne.s32.totalorder %s24, %s27
      %p33 = scmp.eq.s32.totalorder %s14, 0
      %p34 = por %p32, %p33
      %p35 = scmp.ne.s32.totalorder %s24, %s27
      %p36 = scmp.eq.s32.totalorder %s19, 1
      %p37 = por %p35, %p36
      %p38 = scmp.ne.s32.totalorder %s27, %s28
      %p39 = scmp.eq.s32.totalorder %s19, 0
      %p40 = por %p38, %p39
      %p41 = scmp.ne.s32.totalorder %s27, %s28
      %p42 = scmp.eq.s32.totalorder %s20, 1
      %p43 = por %p41, %p42
      %p45 = scmp.ne.s32.totalorder %s28, %s44
      %p46 = scmp.eq.s32.totalorder %s20, 0
      %p47 = por %p45, %p46
      %s49 = sadd.s32 %s48, 1
      %p52 = scmp.eq.s32.totalorder %s14, 1
      %p53 = scmp.ne.s32.totalorder %s48, %s50
      %p54 = scmp.eq.s32.totalorder %s14, 0
      %p55 = por %p53, %p54
      %p56 = scmp.ne.s32.totalorder %s48, %s50
      %p57 = scmp.eq.s32.totalorder %s19, 1
      %p58 = por %p56, %p57
      %p59 = scmp.ne.s32.totalorder %s50, %s51
      %p60 = scmp.eq.s32.totalorder %s19, 0
      %p61 = por %p59, %p60
      %p62 = scmp.ne.s32.totalorder %s50, %s51
      %p63 = scmp.eq.s32.totalorder %s20, 1
      %p64 = por %p62, %p63
      %p66 = scmp.ne.s32.totalorder %s51, %s65
      %p67 = scmp.eq.s32.totalorder %s20, 0
      %p68 = por %p66, %p67
      %s70 = sadd.s32 %s69, 1
      %p73 = scmp.eq.s32.totalorder %s14, 1
      %p74 = scmp.ne.s32.totalorder %s69, %s71
      %p75 = scmp.eq.s32.totalorder %s14, 0
      %p76 = por %p74, %p75
      %p77 = scmp.ne.s32.totalorder %s69, %s71
      %p78 = scmp.eq.s32.totalorder %s19, 1
      %p79 = por %p77, %p78
      %p80 = scmp.ne.s32.totalorder %s71, %s72
      %p81 = scmp.eq.s32.totalorder %s19, 0
      %p82 = por %p80, %p81
      %p83 = scmp.ne.s32.totalorder %s71, %s72
      %p84 = scmp.eq.s32.totalorder %s20, 1
      %p85 = por %p83, %p84
      %p87 = scmp.ne.s32.totalorder %s72, %s86
      %p88 = scmp.eq.s32.totalorder %s20, 0
      %p89 = por %p87, %p88
      %s91 = sadd.s32 %s90, 1
      %p94 = scmp.eq.s32.totalorder %s14, 1
      %p95 = scmp.ne.s32.totalorder %s90, %s92
      %p96 = scmp.eq.s32.totalorder %s14, 0
      %p97 = por %p95, %p96
      %p98 = scmp.ne.s32.totalorder %s90, %s92
      %p99 = scmp.eq.s32.totalorder %s19, 1
      %p100 = por %p98, %p99
      %p101 = scmp.ne.s32.totalorder %s92, %s93
      %p102 = scmp.eq.s32.totalorder %s19, 0
      %p103 = por %p101, %p102
      %p104 = scmp.ne.s32.totalorder %s92, %s93
      %p105 = scmp.eq.s32.totalorder %s20, 1
      %p106 = por %p104, %p105
      %p108 = scmp.ne.s32.totalorder %s93, %s107
      %p109 = scmp.eq.s32.totalorder %s20, 0
      %p110 = por %p108, %p109
      %s111 = ssub.s32 %s14, %s21
      %p112 = scmp.eq.s32.totalorder %s111, 0
      %s114 = sadd.s32 %s113, 1
      %s115 = scalar_select %p112, %s113, %s114
      %p118 = pneg %p112
      %p119 = scmp.eq.s32.totalorder %s14, 1
      %p120 = por %p118, %p119
      %p121 = scmp.ne.s32.totalorder %s113, %s116
      %p122 = scmp.eq.s32.totalorder %s14, 0
      %p123 = por %p121, %p122
      %p124 = scmp.ne.s32.totalorder %s113, %s116
      %p125 = scmp.eq.s32.totalorder %s19, 1
      %p126 = por %p124, %p125
      %p127 = scmp.ne.s32.totalorder %s116, %s117
      %p128 = scmp.eq.s32.totalorder %s19, 0
      %p129 = por %p127, %p128
      %p130 = scmp.ne.s32.totalorder %s116, %s117
      %p131 = scmp.eq.s32.totalorder %s20, 1
      %p132 = por %p130, %p131
      %p134 = scmp.ne.s32.totalorder %s117, %s133
      %p135 = scmp.eq.s32.totalorder %s20, 0
      %p136 = por %p134, %p135
      %p137 = scmp.le.s32.totalorder 1, %s14
      %p138 = scmp.lt.s32.totalorder %s14, 3
      %p139 = pnand %p137, %p138
      %p140 = pneg %p139
      // Predicated region
      $region9: #{tpu_custom_call.1} parent=5 // pred_check
        _
      $region10: #{tpu_custom_call.1} parent=5 // pred_check_branch
        %142 = sbr.rel (%p139) target = $region12
      $region11: #{tpu_custom_call.1} parent=5 // pred_region
        %s143 = ssub.s32 %s14, 1
        // Predicated region
        $region13: #{tpu_custom_call.1} parent=11 // pred_check
          %p144 = pneg %p61
        $region14: #{tpu_custom_call.1} parent=11 // pred_check_branch
          %146 = sbr.rel (%p144) target = $region16
        $region15: #{tpu_custom_call.1} parent=11 // pred_region
          %s148 = ssub.s32 12544, 12544
          %149 = vsyncadd [#allocation5], %s148
          %s150 = sshll.u32 [#allocation4], 4
          %s151 = int_to_ptr.vmem [resolvable:$true] %s150
          %156 = dma.hbm_to_vmem [thread:$0]  %s1, 12544, %s151, [#allocation5], 128, 128, 8
        $region16: #{tpu_custom_call.1} parent=11 // pred_fallthru
          _
        // Predicated region
        $region17: #{tpu_custom_call.1} parent=11 // pred_check
          %p157 = pneg %p82
        $region18: #{tpu_custom_call.1} parent=11 // pred_check_branch
          %159 = sbr.rel (%p157) target = $region20
        $region19: #{tpu_custom_call.1} parent=11 // pred_region
          %s161 = ssub.s32 2048, 2048
          %162 = vsyncadd [#allocation5], %s161
          %s163 = sshll.u32 [#allocation6], 4
          %s164 = int_to_ptr.vmem [resolvable:$true] %s163
          %169 = dma.hbm_to_vmem [thread:$0]  %s2, 2048, %s164, [#allocation5], 128, 128, 8
        $region20: #{tpu_custom_call.1} parent=11 // pred_fallthru
          _
        // Predicated region
        $region21: #{tpu_custom_call.1} parent=11 // pred_check
          %p170 = pneg %p103
        $region22: #{tpu_custom_call.1} parent=11 // pred_check_branch
          %172 = sbr.rel (%p170) target = $region24
        $region23: #{tpu_custom_call.1} parent=11 // pred_region
          _
        $region24: #{tpu_custom_call.1} parent=11 // pred_fallthru
          _
      $region12: #{tpu_custom_call.1} parent=5 // pred_fallthru
        _
      %p173 = scmp.lt.s32.totalorder %s14, 2
      // Predicated region
      $region25: #{tpu_custom_call.1} parent=5 // pred_check
        %p174 = pneg %p173
      $region26: #{tpu_custom_call.1} parent=5 // pred_check_branch
        %176 = sbr.rel (%p174) target = $region28
      $region27: #{tpu_custom_call.1} parent=5 // pred_region
        // Predicated region
        $region29: #{tpu_custom_call.1} parent=27 // pred_check
          %p177 = pneg %p34
        $region30: #{tpu_custom_call.1} parent=27 // pred_check_branch
          %179 = sbr.rel (%p177) target = $region32
        $region31: #{tpu_custom_call.1} parent=27 // pred_region
          %s180 = sand.u32 %s24, 1
          %s181 = scalar_lea.sflag [#allocation3], %s180
          %s182 = sand.u32 %s24, 1
          %s183 = smul.addr %s182, 56
          %s184 = scalar_lea.vmem [#allocation2], %s183
          %s186 = ssub.s32 896, 896
          %187 = vsyncadd %s181, %s186
          %s188 = smul.addr %s14, 7
          %s189 = smul.addr %s188, 128
          %s190 = scalar_lea.hbm %s0, %s189
          %s192 = sshll.u32 %s184, 4
          %s193 = int_to_ptr.vmem [resolvable:$true] %s192
          %195 = dma.hbm_to_vmem [thread:$0]  %s190, 896, %s193, %s181
        $region32: #{tpu_custom_call.1} parent=27 // pred_fallthru
          _
      $region28: #{tpu_custom_call.1} parent=5 // pred_fallthru
        _
      %p196 = scmp.le.s32.totalorder 1, %s14
      %p197 = scmp.lt.s32.totalorder %s14, 3
      %p198 = pnand %p196, %p197
      %p199 = pneg %p198
      // Predicated region
      $region33: #{tpu_custom_call.1} parent=5 // pred_check
        _
      $region34: #{tpu_custom_call.1} parent=5 // pred_check_branch
        %201 = sbr.rel (%p198) target = $region36
      $region35: #{tpu_custom_call.1} parent=5 // pred_region
        %s202 = ssub.s32 %s14, 1
        %s203 = sand.u32 %s27, 1
        %s204 = scalar_lea.sflag [#allocation3], %s203
        %s205 = sand.u32 %s27, 1
        %s206 = smul.addr %s205, 56
        %s207 = scalar_lea.vmem [#allocation2], %s206
        // Predicated region
        $region37: #{tpu_custom_call.1} parent=35 // pred_check
          %p208 = pneg %p40
        $region38: #{tpu_custom_call.1} parent=35 // pred_check_branch
          %210 = sbr.rel (%p208) target = $region40
        $region39: #{tpu_custom_call.1} parent=35 // pred_region
          %211 = dma.done %s204, 896
        $region40: #{tpu_custom_call.1} parent=35 // pred_fallthru
          _
        // Predicated region
        $region41: #{tpu_custom_call.1} parent=35 // pred_check
          %p212 = pneg %p61
        $region42: #{tpu_custom_call.1} parent=35 // pred_check_branch
          %214 = sbr.rel (%p212) target = $region44
        $region43: #{tpu_custom_call.1} parent=35 // pred_region
          %215 = dma.done [#allocation5], 12544
        $region44: #{tpu_custom_call.1} parent=35 // pred_fallthru
          _
        // Predicated region
        $region45: #{tpu_custom_call.1} parent=35 // pred_check
          %p216 = pneg %p82
        $region46: #{tpu_custom_call.1} parent=35 // pred_check_branch
          %218 = sbr.rel (%p216) target = $region48
        $region47: #{tpu_custom_call.1} parent=35 // pred_region
          %219 = dma.done [#allocation5], 2048
        $region48: #{tpu_custom_call.1} parent=35 // pred_fallthru
          _
        %s220 = sand.u32 %s27, 1
        %s221 = scalar_lea.sflag [#allocation3], %s220
        %s222 = sand.u32 %s27, 1
        %s223 = smul.addr %s222, 56
        %s224 = scalar_lea.vmem [#allocation2], %s223
        %p225 = pneg %p40
        %p226 = pneg %p37
        %p227 = pneg %p61
        %p228 = pneg %p58
        %p229 = pneg %p82
        %p230 = pneg %p79
        %p231 = pneg %p103
        %p232 = pneg %p100
        %p233 = pneg %p129
        %p234 = pneg %p126
        %p235 = scmp.lt.s32.totalorder %s19, 1
        %s236 = scalar_select %p235, %s19, 1
        %s237 = smul.addr %s236, 8
        %s238 = scalar_lea.vmem %s4, %s237
        %p239 = scmp.lt.s32.totalorder %s19, 1
        %s240 = scalar_select %p239, %s19, 1
        %s241 = smul.addr %s240, 8
        %s242 = scalar_lea.vmem %s4, %s241
        %v243 = vld [vmem:[%s207] sm:$0xff]
        %v244 = vld [vmem:[%s207 + $0x8] sm:$0xff]
        %v245 = vld [vmem:[%s207 + $0x10] sm:$0xff]
        %v246 = vld [vmem:[%s207 + $0x18] sm:$0xff]
        %v247 = vld [vmem:[%s207 + $0x20] sm:$0xff]
        %v248 = vld [vmem:[%s207 + $0x28] sm:$0xff]
        %v249 = vld [vmem:[%s207 + $0x30] sm:$0xff]
        %v250 = vld [vmem:[#allocation4] sm:$0xff]
        %v251 = vld [vmem:[#allocation4 + $0x8] sm:$0xff]
        %v252 = vld [vmem:[#allocation4 + $0x10] sm:$0xff]
        %v253 = vld [vmem:[#allocation4 + $0x18] sm:$0xff]
        %v254 = vld [vmem:[#allocation4 + $0x20] sm:$0xff]
        %v255 = vld [vmem:[#allocation4 + $0x28] sm:$0xff]
        %v256 = vld [vmem:[#allocation4 + $0x30] sm:$0xff]
        %v257 = vld [vmem:[#allocation4 + $0x38] sm:$0xff]
        %v258 = vld [vmem:[#allocation4 + $0x40] sm:$0xff]
        %v259 = vld [vmem:[#allocation4 + $0x48] sm:$0xff]
        %v260 = vld [vmem:[#allocation4 + $0x50] sm:$0xff]
        %v261 = vld [vmem:[#allocation4 + $0x58] sm:$0xff]
        %v262 = vld [vmem:[#allocation4 + $0x60] sm:$0xff]
        %v263 = vld [vmem:[#allocation4 + $0x68] sm:$0xff]
        %v264 = vld [vmem:[#allocation4 + $0x70] sm:$0xff]
        %v265 = vld [vmem:[#allocation4 + $0x78] sm:$0xff]
        %v266 = vld [vmem:[#allocation4 + $0x80] sm:$0xff]
        %v267 = vld [vmem:[#allocation4 + $0x88] sm:$0xff]
        %v268 = vld [vmem:[#allocation4 + $0x90] sm:$0xff]
        %v269 = vld [vmem:[#allocation4 + $0x98] sm:$0xff]
        %v270 = vld [vmem:[#allocation4 + $0xa0] sm:$0xff]
        %v271 = vld [vmem:[#allocation4 + $0xa8] sm:$0xff]
        %v272 = vld [vmem:[#allocation4 + $0xb0] sm:$0xff]
        %v273 = vld [vmem:[#allocation4 + $0xb8] sm:$0xff]
        %v274 = vld [vmem:[#allocation4 + $0xc0] sm:$0xff]
        %v275 = vld [vmem:[#allocation4 + $0xc8] sm:$0xff]
        %v276 = vld [vmem:[#allocation4 + $0xd0] sm:$0xff]
        %v277 = vld [vmem:[#allocation4 + $0xd8] sm:$0xff]
        %v278 = vld [vmem:[#allocation4 + $0xe0] sm:$0xff]
        %v279 = vld [vmem:[#allocation4 + $0xe8] sm:$0xff]
        %v280 = vld [vmem:[#allocation4 + $0xf0] sm:$0xff]
        %v281 = vld [vmem:[#allocation4 + $0xf8] sm:$0xff]
        %v282 = vld [vmem:[#allocation4 + $0x100] sm:$0xff]
        %v283 = vld [vmem:[#allocation4 + $0x108] sm:$0xff]
        %v284 = vld [vmem:[#allocation4 + $0x110] sm:$0xff]
        %v285 = vld [vmem:[#allocation4 + $0x118] sm:$0xff]
        %v286 = vld [vmem:[#allocation4 + $0x120] sm:$0xff]
        %v287 = vld [vmem:[#allocation4 + $0x128] sm:$0xff]
        %v288 = vld [vmem:[#allocation4 + $0x130] sm:$0xff]
        %v289 = vld [vmem:[#allocation4 + $0x138] sm:$0xff]
        %v290 = vld [vmem:[#allocation4 + $0x140] sm:$0xff]
        %v291 = vld [vmem:[#allocation4 + $0x148] sm:$0xff]
        %v292 = vld [vmem:[#allocation4 + $0x150] sm:$0xff]
        %v293 = vld [vmem:[#allocation4 + $0x158] sm:$0xff]
        %v294 = vld [vmem:[#allocation4 + $0x160] sm:$0xff]
        %v295 = vld [vmem:[#allocation4 + $0x168] sm:$0xff]
        %v296 = vld [vmem:[#allocation4 + $0x170] sm:$0xff]
        %v297 = vld [vmem:[#allocation4 + $0x178] sm:$0xff]
        %v298 = vld [vmem:[#allocation4 + $0x180] sm:$0xff]
        %v299 = vld [vmem:[#allocation4 + $0x188] sm:$0xff]
        %v300 = vld [vmem:[#allocation4 + $0x190] sm:$0xff]
        %v301 = vld [vmem:[#allocation4 + $0x198] sm:$0xff]
        %v302 = vld [vmem:[#allocation4 + $0x1a0] sm:$0xff]
        %v303 = vld [vmem:[#allocation4 + $0x1a8] sm:$0xff]
        %v304 = vld [vmem:[#allocation4 + $0x1b0] sm:$0xff]
        %v305 = vld [vmem:[#allocation4 + $0x1b8] sm:$0xff]
        %v306 = vld [vmem:[#allocation4 + $0x1c0] sm:$0xff]
        %v307 = vld [vmem:[#allocation4 + $0x1c8] sm:$0xff]
        %v308 = vld [vmem:[#allocation4 + $0x1d0] sm:$0xff]
        %v309 = vld [vmem:[#allocation4 + $0x1d8] sm:$0xff]
        %v310 = vld [vmem:[#allocation4 + $0x1e0] sm:$0xff]
        %v311 = vld [vmem:[#allocation4 + $0x1e8] sm:$0xff]
        %v312 = vld [vmem:[#allocation4 + $0x1f0] sm:$0xff]
        %v313 = vld [vmem:[#allocation4 + $0x1f8] sm:$0xff]
        %v314 = vld [vmem:[#allocation4 + $0x200] sm:$0xff]
        %v315 = vld [vmem:[#allocation4 + $0x208] sm:$0xff]
        %v316 = vld [vmem:[#allocation4 + $0x210] sm:$0xff]
        %v317 = vld [vmem:[#allocation4 + $0x218] sm:$0xff]
        %v318 = vld [vmem:[#allocation4 + $0x220] sm:$0xff]
        %v319 = vld [vmem:[#allocation4 + $0x228] sm:$0xff]
        %v320 = vld [vmem:[#allocation4 + $0x230] sm:$0xff]
        %v321 = vld [vmem:[#allocation4 + $0x238] sm:$0xff]
        %v322 = vld [vmem:[#allocation4 + $0x240] sm:$0xff]
        %v323 = vld [vmem:[#allocation4 + $0x248] sm:$0xff]
        %v324 = vld [vmem:[#allocation4 + $0x250] sm:$0xff]
        %v325 = vld [vmem:[#allocation4 + $0x258] sm:$0xff]
        %v326 = vld [vmem:[#allocation4 + $0x260] sm:$0xff]
        %v327 = vld [vmem:[#allocation4 + $0x268] sm:$0xff]
        %v328 = vld [vmem:[#allocation4 + $0x270] sm:$0xff]
        %v329 = vld [vmem:[#allocation4 + $0x278] sm:$0xff]
        %v330 = vld [vmem:[#allocation4 + $0x280] sm:$0xff]
        %v331 = vld [vmem:[#allocation4 + $0x288] sm:$0xff]
        %v332 = vld [vmem:[#allocation4 + $0x290] sm:$0xff]
        %v333 = vld [vmem:[#allocation4 + $0x298] sm:$0xff]
        %v334 = vld [vmem:[#allocation4 + $0x2a0] sm:$0xff]
        %v335 = vld [vmem:[#allocation4 + $0x2a8] sm:$0xff]
        %v336 = vld [vmem:[#allocation4 + $0x2b0] sm:$0xff]
        %v337 = vld [vmem:[#allocation4 + $0x2b8] sm:$0xff]
        %v338 = vld [vmem:[#allocation4 + $0x2c0] sm:$0xff]
        %v339 = vld [vmem:[#allocation4 + $0x2c8] sm:$0xff]
        %v340 = vld [vmem:[#allocation4 + $0x2d0] sm:$0xff]
        %v341 = vld [vmem:[#allocation4 + $0x2d8] sm:$0xff]
        %v342 = vld [vmem:[#allocation4 + $0x2e0] sm:$0xff]
        %v343 = vld [vmem:[#allocation4 + $0x2e8] sm:$0xff]
        %v344 = vld [vmem:[#allocation4 + $0x2f0] sm:$0xff]
        %v345 = vld [vmem:[#allocation4 + $0x2f8] sm:$0xff]
        %v346 = vld [vmem:[#allocation4 + $0x300] sm:$0xff]
        %v347 = vld [vmem:[#allocation4 + $0x308] sm:$0xff]
        %vm348 = vcmask 130048
        %v350 = vsel %vm348, %v249, 0
        %352 = vmatprep.subr.mxu0 0.0
        %353 = vmatpush1.msra.mxu0 %v265
        %354 = vmatprep.subr.mxu0 0.0
        %355 = vmatpush1.msra.mxu0 %v264
        %356 = vmatprep.subr.mxu0 0.0
        %357 = vmatpush1.msra.mxu0 %v263
        %358 = vmatprep.subr.mxu0 0.0
        %359 = vmatpush1.msra.mxu0 %v262
        %360 = vmatprep.subr.mxu0 0.0
        %361 = vmatpush1.msra.mxu0 %v261
        %362 = vmatprep.subr.mxu0 0.0
        %363 = vmatpush1.msra.mxu0 %v260
        %364 = vmatprep.subr.mxu0 0.0
        %365 = vmatpush1.msra.mxu0 %v259
        %366 = vmatprep.subr.mxu0 0.0
        %367 = vmatpush1.msra.mxu0 %v258
        %368 = vmatprep.subr.mxu0 0.0
        %369 = vmatpush1.msra.mxu0 %v257
        %370 = vmatprep.subr.mxu0 0.0
        %371 = vmatpush1.msra.mxu0 %v256
        %372 = vmatprep.subr.mxu0 0.0
        %373 = vmatpush1.msra.mxu0 %v255
        %374 = vmatprep.subr.mxu0 0.0
        %375 = vmatpush1.msra.mxu0 %v254
        %376 = vmatprep.subr.mxu0 0.0
        %377 = vmatpush1.msra.mxu0 %v253
        %378 = vmatprep.subr.mxu0 0.0
        %379 = vmatpush1.msra.mxu0 %v252
        %380 = vmatprep.subr.mxu0 0.0
        %381 = vmatpush1.msra.mxu0 %v251
        %382 = vmatprep.subr.mxu0 0.0
        %383 = vmatpush1.msra.mxu0 %v250
        %384 = vmatprep.subr.mxu0 0.0
        %385 = vmatpush2.msra.mxu0 %v281
        %386 = vmatprep.subr.mxu0 0.0
        %387 = vmatpush2.msra.mxu0 %v280
        %388 = vmatprep.subr.mxu0 0.0
        %389 = vmatpush2.msra.mxu0 %v279
        %390 = vmatprep.subr.mxu0 0.0
        %391 = vmatpush2.msra.mxu0 %v278
        %392 = vmatprep.subr.mxu0 0.0
        %393 = vmatpush2.msra.mxu0 %v277
        %394 = vmatprep.subr.mxu0 0.0
        %395 = vmatpush2.msra.mxu0 %v276
        %396 = vmatprep.subr.mxu0 0.0
        %397 = vmatpush2.msra.mxu0 %v275
        %398 = vmatprep.subr.mxu0 0.0
        %399 = vmatpush2.msra.mxu0 %v274
        %400 = vmatprep.subr.mxu0 0.0
        %401 = vmatpush2.msra.mxu0 %v273
        %402 = vmatprep.subr.mxu0 0.0
        %403 = vmatpush2.msra.mxu0 %v272
        %404 = vmatprep.subr.mxu0 0.0
        %405 = vmatpush2.msra.mxu0 %v271
        %406 = vmatprep.subr.mxu0 0.0
        %407 = vmatpush2.msra.mxu0 %v270
        %408 = vmatprep.subr.mxu0 0.0
        %409 = vmatpush2.msra.mxu0 %v269
        %410 = vmatprep.subr.mxu0 0.0
        %411 = vmatpush2.msra.mxu0 %v268
        %412 = vmatprep.subr.mxu0 0.0
        %413 = vmatpush2.msra.mxu0 %v267
        %414 = vmatprep.subr.mxu0 0.0
        %415 = vmatpush2.msra.mxu0 %v266
        %416 = vmatprep.mubr.f32.mxu0 %v244
        %417 = vmatmul.mubr.f32.gmra.mxu0 %v243
        %v418 = vpop.f32.mrf.mxu0
        %v419 = vadd.f32 0.0, %v418
        %v420 = vpop.f32.mrf.mxu0
        %421 = vdwg.mxu0
        %422 = vmatprep.subr.mxu0 0.0
        %423 = vmatpush1.msra.mxu0 %v297
        %424 = vmatprep.subr.mxu0 0.0
        %425 = vmatpush1.msra.mxu0 %v296
        %426 = vmatprep.subr.mxu0 0.0
        %427 = vmatpush1.msra.mxu0 %v295
        %428 = vmatprep.subr.mxu0 0.0
        %429 = vmatpush1.msra.mxu0 %v294
        %430 = vmatprep.subr.mxu0 0.0
        %431 = vmatpush1.msra.mxu0 %v293
        %432 = vmatprep.subr.mxu0 0.0
        %433 = vmatpush1.msra.mxu0 %v292
        %434 = vmatprep.subr.mxu0 0.0
        %435 = vmatpush1.msra.mxu0 %v291
        %436 = vmatprep.subr.mxu0 0.0
        %437 = vmatpush1.msra.mxu0 %v290
        %438 = vmatprep.subr.mxu0 0.0
        %439 = vmatpush1.msra.mxu0 %v289
        %440 = vmatprep.subr.mxu0 0.0
        %441 = vmatpush1.msra.mxu0 %v288
        %442 = vmatprep.subr.mxu0 0.0
        %443 = vmatpush1.msra.mxu0 %v287
        %444 = vmatprep.subr.mxu0 0.0
        %445 = vmatpush1.msra.mxu0 %v286
        %446 = vmatprep.subr.mxu0 0.0
        %447 = vmatpush1.msra.mxu0 %v285
        %448 = vmatprep.subr.mxu0 0.0
        %449 = vmatpush1.msra.mxu0 %v284
        %450 = vmatprep.subr.mxu0 0.0
        %451 = vmatpush1.msra.mxu0 %v283
        %452 = vmatprep.subr.mxu0 0.0
        %453 = vmatpush1.msra.mxu0 %v282
        %454 = vmatprep.subr.mxu0 0.0
        %455 = vmatpush2.msra.mxu0 %v313
        %456 = vmatprep.subr.mxu0 0.0
        %457 = vmatpush2.msra.mxu0 %v312
        %458 = vmatprep.subr.mxu0 0.0
        %459 = vmatpush2.msra.mxu0 %v311
        %460 = vmatprep.subr.mxu0 0.0
        %461 = vmatpush2.msra.mxu0 %v310
        %462 = vmatprep.subr.mxu0 0.0
        %463 = vmatpush2.msra.mxu0 %v309
        %464 = vmatprep.subr.mxu0 0.0
        %465 = vmatpush2.msra.mxu0 %v308
        %466 = vmatprep.subr.mxu0 0.0
        %467 = vmatpush2.msra.mxu0 %v307
        %468 = vmatprep.subr.mxu0 0.0
        %469 = vmatpush2.msra.mxu0 %v306
        %470 = vmatprep.subr.mxu0 0.0
        %471 = vmatpush2.msra.mxu0 %v305
        %472 = vmatprep.subr.mxu0 0.0
        %473 = vmatpush2.msra.mxu0 %v304
        %474 = vmatprep.subr.mxu0 0.0
        %475 = vmatpush2.msra.mxu0 %v303
        %476 = vmatprep.subr.mxu0 0.0
        %477 = vmatpush2.msra.mxu0 %v302
        %478 = vmatprep.subr.mxu0 0.0
        %479 = vmatpush2.msra.mxu0 %v301
        %480 = vmatprep.subr.mxu0 0.0
        %481 = vmatpush2.msra.mxu0 %v300
        %482 = vmatprep.subr.mxu0 0.0
        %483 = vmatpush2.msra.mxu0 %v299
        %484 = vmatprep.subr.mxu0 0.0
        %485 = vmatpush2.msra.mxu0 %v298
        %486 = vmatprep.mubr.f32.mxu0 %v246
        %487 = vmatmul.mubr.f32.gmra.mxu0 %v245
        %v488 = vpop.f32.mrf.mxu0
        %v489 = vadd.f32 %v419, %v488
        %v490 = vpop.f32.mrf.mxu0
        %491 = vdwg.mxu0
        %492 = vmatprep.subr.mxu0 0.0
        %493 = vmatpush1.msra.mxu0 %v329
        %494 = vmatprep.subr.mxu0 0.0
        %495 = vmatpush1.msra.mxu0 %v328
        %496 = vmatprep.subr.mxu0 0.0
        %497 = vmatpush1.msra.mxu0 %v327
        %498 = vmatprep.subr.mxu0 0.0
        %499 = vmatpush1.msra.mxu0 %v326
        %500 = vmatprep.subr.mxu0 0.0
        %501 = vmatpush1.msra.mxu0 %v325
        %502 = vmatprep.subr.mxu0 0.0
        %503 = vmatpush1.msra.mxu0 %v324
        %504 = vmatprep.subr.mxu0 0.0
        %505 = vmatpush1.msra.mxu0 %v323
        %506 = vmatprep.subr.mxu0 0.0
        %507 = vmatpush1.msra.mxu0 %v322
        %508 = vmatprep.subr.mxu0 0.0
        %509 = vmatpush1.msra.mxu0 %v321
        %510 = vmatprep.subr.mxu0 0.0
        %511 = vmatpush1.msra.mxu0 %v320
        %512 = vmatprep.subr.mxu0 0.0
        %513 = vmatpush1.msra.mxu0 %v319
        %514 = vmatprep.subr.mxu0 0.0
        %515 = vmatpush1.msra.mxu0 %v318
        %516 = vmatprep.subr.mxu0 0.0
        %517 = vmatpush1.msra.mxu0 %v317
        %518 = vmatprep.subr.mxu0 0.0
        %519 = vmatpush1.msra.mxu0 %v316
        %520 = vmatprep.subr.mxu0 0.0
        %521 = vmatpush1.msra.mxu0 %v315
        %522 = vmatprep.subr.mxu0 0.0
        %523 = vmatpush1.msra.mxu0 %v314
        %524 = vmatprep.subr.mxu0 0.0
        %525 = vmatpush2.msra.mxu0 %v345
        %526 = vmatprep.subr.mxu0 0.0
        %527 = vmatpush2.msra.mxu0 %v344
        %528 = vmatprep.subr.mxu0 0.0
        %529 = vmatpush2.msra.mxu0 %v343
        %530 = vmatprep.subr.mxu0 0.0
        %531 = vmatpush2.msra.mxu0 %v342
        %532 = vmatprep.subr.mxu0 0.0
        %533 = vmatpush2.msra.mxu0 %v341
        %534 = vmatprep.subr.mxu0 0.0
        %535 = vmatpush2.msra.mxu0 %v340
        %536 = vmatprep.subr.mxu0 0.0
        %537 = vmatpush2.msra.mxu0 %v339
        %538 = vmatprep.subr.mxu0 0.0
        %539 = vmatpush2.msra.mxu0 %v338
        %540 = vmatprep.subr.mxu0 0.0
        %541 = vmatpush2.msra.mxu0 %v337
        %542 = vmatprep.subr.mxu0 0.0
        %543 = vmatpush2.msra.mxu0 %v336
        %544 = vmatprep.subr.mxu0 0.0
        %545 = vmatpush2.msra.mxu0 %v335
        %546 = vmatprep.subr.mxu0 0.0
        %547 = vmatpush2.msra.mxu0 %v334
        %548 = vmatprep.subr.mxu0 0.0
        %549 = vmatpush2.msra.mxu0 %v333
        %550 = vmatprep.subr.mxu0 0.0
        %551 = vmatpush2.msra.mxu0 %v332
        %552 = vmatprep.subr.mxu0 0.0
        %553 = vmatpush2.msra.mxu0 %v331
        %554 = vmatprep.subr.mxu0 0.0
        %555 = vmatpush2.msra.mxu0 %v330
        %556 = vmatprep.mubr.f32.mxu0 %v248
        %557 = vmatmul.mubr.f32.gmra.mxu0 %v247
        %v558 = vpop.f32.mrf.mxu0
        %v559 = vadd.f32 %v489, %v558
        %v560 = vpop.f32.mrf.mxu0
        %561 = vdwg.mxu0
        %562 = vmatprep.subr.mxu0 0.0
        %563 = vmatpush1.msra.mxu0 0.0
        %564 = vmatprep.subr.mxu0 0.0
        %565 = vmatpush1.msra.mxu0 0.0
        %566 = vmatprep.subr.mxu0 0.0
        %567 = vmatpush1.msra.mxu0 0.0
        %568 = vmatprep.subr.mxu0 0.0
        %569 = vmatpush1.msra.mxu0 0.0
        %570 = vmatprep.subr.mxu0 0.0
        %571 = vmatpush1.msra.mxu0 0.0
        %572 = vmatprep.subr.mxu0 0.0
        %573 = vmatpush1.msra.mxu0 0.0
        %574 = vmatprep.subr.mxu0 0.0
        %575 = vmatpush1.msra.mxu0 0.0
        %576 = vmatprep.subr.mxu0 0.0
        %577 = vmatpush1.msra.mxu0 0.0
        %578 = vmatprep.subr.mxu0 0.0
        %579 = vmatpush1.msra.mxu0 0.0
        %580 = vmatprep.subr.mxu0 0.0
        %581 = vmatpush1.msra.mxu0 0.0
        %582 = vmatprep.subr.mxu0 0.0
        %583 = vmatpush1.msra.mxu0 0.0
        %584 = vmatprep.subr.mxu0 0.0
        %585 = vmatpush1.msra.mxu0 0.0
        %586 = vmatprep.subr.mxu0 0.0
        %587 = vmatpush1.msra.mxu0 0.0
        %588 = vmatprep.subr.mxu0 0.0
        %589 = vmatpush1.msra.mxu0 0.0
        %590 = vmatprep.subr.mxu0 0.0
        %591 = vmatpush1.msra.mxu0 %v347
        %592 = vmatprep.subr.mxu0 0.0
        %593 = vmatpush1.msra.mxu0 %v346
        %594 = vmatprep.subr.mxu0 0.0
        %595 = vmatpush2.msra.mxu0 0.0
        %596 = vmatprep.subr.mxu0 0.0
        %597 = vmatpush2.msra.mxu0 0.0
        %598 = vmatprep.subr.mxu0 0.0
        %599 = vmatpush2.msra.mxu0 0.0
        %600 = vmatprep.subr.mxu0 0.0
        %601 = vmatpush2.msra.mxu0 0.0
        %602 = vmatprep.subr.mxu0 0.0
        %603 = vmatpush2.msra.mxu0 0.0
        %604 = vmatprep.subr.mxu0 0.0
        %605 = vmatpush2.msra.mxu0 0.0
        %606 = vmatprep.subr.mxu0 0.0
        %607 = vmatpush2.msra.mxu0 0.0
        %608 = vmatprep.subr.mxu0 0.0
        %609 = vmatpush2.msra.mxu0 0.0
        %610 = vmatprep.subr.mxu0 0.0
        %611 = vmatpush2.msra.mxu0 0.0
        %612 = vmatprep.subr.mxu0 0.0
        %613 = vmatpush2.msra.mxu0 0.0
        %614 = vmatprep.subr.mxu0 0.0
        %615 = vmatpush2.msra.mxu0 0.0
        %616 = vmatprep.subr.mxu0 0.0
        %617 = vmatpush2.msra.mxu0 0.0
        %618 = vmatprep.subr.mxu0 0.0
        %619 = vmatpush2.msra.mxu0 0.0
        %620 = vmatprep.subr.mxu0 0.0
        %621 = vmatpush2.msra.mxu0 0.0
        %622 = vmatprep.subr.mxu0 0.0
        %623 = vmatpush2.msra.mxu0 0.0
        %624 = vmatprep.subr.mxu0 0.0
        %625 = vmatpush2.msra.mxu0 0.0
        %626 = vmatprep.mubr.f32.mxu0 0.0
        %627 = vmatmul.mubr.f32.gmra.mxu0 %v350
        %v628 = vpop.f32.mrf.mxu0
        %v629 = vadd.f32 %v559, %v628
        %v630 = vpop.f32.mrf.mxu0
        %631 = vdwg.mxu0
        %v632 = vmax.f32 %v629, 0.0
        %v633 = vld [vmem:[#allocation6] sm:$0xff]
        %v634 = vld [vmem:[#allocation6 + $0x8] sm:$0xff]
        %v635 = vld [vmem:[#allocation6 + $0x10] sm:$0xff]
        %v636 = vld [vmem:[#allocation6 + $0x18] sm:$0xff]
        %v637 = vld [vmem:[#allocation6 + $0x20] sm:$0xff]
        %v638 = vld [vmem:[#allocation6 + $0x28] sm:$0xff]
        %v639 = vld [vmem:[#allocation6 + $0x30] sm:$0xff]
        %v640 = vld [vmem:[#allocation6 + $0x38] sm:$0xff]
        %v641 = vld [vmem:[#allocation6 + $0x40] sm:$0xff]
        %v642 = vld [vmem:[#allocation6 + $0x48] sm:$0xff]
        %v643 = vld [vmem:[#allocation6 + $0x50] sm:$0xff]
        %v644 = vld [vmem:[#allocation6 + $0x58] sm:$0xff]
        %v645 = vld [vmem:[#allocation6 + $0x60] sm:$0xff]
        %v646 = vld [vmem:[#allocation6 + $0x68] sm:$0xff]
        %v647 = vld [vmem:[#allocation6 + $0x70] sm:$0xff]
        %v648 = vld [vmem:[#allocation6 + $0x78] sm:$0xff]
        %649 = vmatprep.subr.mxu0 0.0
        %650 = vmatpush1.msra.mxu0 %v648
        %651 = vmatprep.subr.mxu0 0.0
        %652 = vmatpush1.msra.mxu0 %v647
        %653 = vmatprep.subr.mxu0 0.0
        %654 = vmatpush1.msra.mxu0 %v646
        %655 = vmatprep.subr.mxu0 0.0
        %656 = vmatpush1.msra.mxu0 %v645
        %657 = vmatprep.subr.mxu0 0.0
        %658 = vmatpush1.msra.mxu0 %v644
        %659 = vmatprep.subr.mxu0 0.0
        %660 = vmatpush1.msra.mxu0 %v643
        %661 = vmatprep.subr.mxu0 0.0
        %662 = vmatpush1.msra.mxu0 %v642
        %663 = vmatprep.subr.mxu0 0.0
        %664 = vmatpush1.msra.mxu0 %v641
        %665 = vmatprep.subr.mxu0 0.0
        %666 = vmatpush1.msra.mxu0 %v640
        %667 = vmatprep.subr.mxu0 0.0
        %668 = vmatpush1.msra.mxu0 %v639
        %669 = vmatprep.subr.mxu0 0.0
        %670 = vmatpush1.msra.mxu0 %v638
        %671 = vmatprep.subr.mxu0 0.0
        %672 = vmatpush1.msra.mxu0 %v637
        %673 = vmatprep.subr.mxu0 0.0
        %674 = vmatpush1.msra.mxu0 %v636
        %675 = vmatprep.subr.mxu0 0.0
        %676 = vmatpush1.msra.mxu0 %v635
        %677 = vmatprep.subr.mxu0 0.0
        %678 = vmatpush1.msra.mxu0 %v634
        %679 = vmatprep.subr.mxu0 0.0
        %680 = vmatpush1.msra.mxu0 %v633
        %681 = vmatprep.subr.mxu0 0.0
        %682 = vmatpush2.msra.mxu0 0.0
        %683 = vmatprep.subr.mxu0 0.0
        %684 = vmatpush2.msra.mxu0 0.0
        %685 = vmatprep.subr.mxu0 0.0
        %686 = vmatpush2.msra.mxu0 0.0
        %687 = vmatprep.subr.mxu0 0.0
        %688 = vmatpush2.msra.mxu0 0.0
        %689 = vmatprep.subr.mxu0 0.0
        %690 = vmatpush2.msra.mxu0 0.0
        %691 = vmatprep.subr.mxu0 0.0
        %692 = vmatpush2.msra.mxu0 0.0
        %693 = vmatprep.subr.mxu0 0.0
        %694 = vmatpush2.msra.mxu0 0.0
        %695 = vmatprep.subr.mxu0 0.0
        %696 = vmatpush2.msra.mxu0 0.0
        %697 = vmatprep.subr.mxu0 0.0
        %698 = vmatpush2.msra.mxu0 0.0
        %699 = vmatprep.subr.mxu0 0.0
        %700 = vmatpush2.msra.mxu0 0.0
        %701 = vmatprep.subr.mxu0 0.0
        %702 = vmatpush2.msra.mxu0 0.0
        %703 = vmatprep.subr.mxu0 0.0
        %704 = vmatpush2.msra.mxu0 0.0
        %705 = vmatprep.subr.mxu0 0.0
        %706 = vmatpush2.msra.mxu0 0.0
        %707 = vmatprep.subr.mxu0 0.0
        %708 = vmatpush2.msra.mxu0 0.0
        %709 = vmatprep.subr.mxu0 0.0
        %710 = vmatpush2.msra.mxu0 0.0
        %711 = vmatprep.subr.mxu0 0.0
        %712 = vmatpush2.msra.mxu0 0.0
        %713 = vmatprep.mubr.f32.mxu0 0.0
        %714 = vmatmul.mubr.f32.gmra.mxu0 %v632
        %v715 = vpop.f32.mrf.mxu0
        %v716 = vadd.f32 0.0, %v715
        %v717 = vpop.f32.mrf.mxu0
        %718 = vdwg.mxu0
        %v719 = vmax.f32 %v716, 0.0
        %v720 = vld [vmem:[%s3] sm:$0x1]
        %v722 = vlaneseq
        %v723 = vshrl.u32 %v722, 7
        %v724 = vsub.s32 0, %v723
        %v725 = vrot.slane %v720, %v724
        %v727 = vmul.f32 %v719, %v725
        %728 = vadd.xlane.f32.xlu0 %v727
        %v729 = vpop.xlane.xlu0 %728
        %vm730 = vcmask 7168
        %731 = vst.msk [vmem:[%s242] sm:$0xff] %vm730, %v729
        %p732 = scmp.lt.s32.totalorder %s19, 1
        %s733 = scalar_select %p732, %s19, 1
        %s734 = smul.addr %s733, 8
        %s735 = scalar_lea.vmem %s4, %s734
        // Predicated region
        $region49: #{tpu_custom_call.1} parent=35 // pred_check
          %p736 = pneg %p126
        $region50: #{tpu_custom_call.1} parent=35 // pred_check_branch
          %738 = sbr.rel (%p736) target = $region52
        $region51: #{tpu_custom_call.1} parent=35 // pred_region
          _
        $region52: #{tpu_custom_call.1} parent=35 // pred_fallthru
          _
      $region36: #{tpu_custom_call.1} parent=5 // pred_fallthru
        _
      %p739 = scmp.le.s32.totalorder 2, %s14
      // Predicated region
      $region53: #{tpu_custom_call.1} parent=5 // pred_check
        %p740 = pneg %p739
      $region54: #{tpu_custom_call.1} parent=5 // pred_check_branch
        %742 = sbr.rel (%p740) target = $region56
      $region55: #{tpu_custom_call.1} parent=5 // pred_region
        %s743 = ssub.s32 %s14, 2
        // Predicated region
        $region57: #{tpu_custom_call.1} parent=55 // pred_check
          %p744 = pneg %p132
        $region58: #{tpu_custom_call.1} parent=55 // pred_check_branch
          %746 = sbr.rel (%p744) target = $region60
        $region59: #{tpu_custom_call.1} parent=55 // pred_region
          %p747 = scmp.lt.s32.totalorder %s20, 1
          %s748 = scalar_select %p747, %s20, 1
          %s749 = smul.addr %s748, 8
          %s750 = scalar_lea.vmem %s4, %s749
        $region60: #{tpu_custom_call.1} parent=55 // pred_fallthru
          _
      $region56: #{tpu_custom_call.1} parent=5 // pred_fallthru
        _
    $region6: #{tpu_custom_call.1} parent=1 // loop_footer
      %s18 = sadd.s32 1, %s14
    $region7: #{tpu_custom_call.1} parent=1 // loop_footer_branch
      %13 = sbr.rel target = $region3
    $region8: #{tpu_custom_call.1} parent=1 // loop_exit
      _
    %751 = vsyncpa [#allocation3], 1
    %s752 = scalar_lea.sflag [#allocation3], 1
    %753 = vsyncpa %s752, 1
    %754 = vsyncpa [#allocation5], 1

</llo_original>
